<compile_context>
chip_gen: v7x
topology: tpu7x:2x2x1
jax: 0.10.0
libtpu: 0.0.40
codegen_flags: <defaults>
</compile_context>

<pallas_src>
import functools

import jax
import jax.numpy as jnp
from jax.experimental import pallas as pl
from jax.experimental.pallas import tpu as pltpu

EPS_ATTN = 1e-6
EPS_BN = 1e-5
EPS_NORM = 1e-12   # tiny guard under rsqrt (avoids NaN on all-zero columns)


def fam_kernel(fsp_ref, fcp_ref, w1sp_ref, w1cp_ref, bnb_ref, wqkv_ref,
               gamma_ref, out_ref, cn1_ref, kn1_ref, qn1_ref, *, cq_pad):
    bblk, c, n = out_ref.shape

    gamma = gamma_ref[0]                      # scalar from SMEM
    w1sp = w1sp_ref[...]                      # (C, Csp)  bf16, BN scale folded
    w1cp = w1cp_ref[...]                      # (C, Ccp)  bf16, BN scale folded
    bnb = bnb_ref[...]                        # (C, 1)    f32 (folded BN shift)
    wqkv = wqkv_ref[...]                      # (2*cq_pad+C, C+8) bf16, bias cols

    # Ones rows used for the MXU "free column/row" folds. Written every grid
    # step (cheap) instead of once under pl.when(program_id==0) so the kernel
    # stays correct when the parallel batch axis is sharded across TensorCores.
    ones8 = (jax.lax.broadcasted_iota(jnp.int32, (8, n), 0) == 0)
    cn1_ref[c:] = ones8.astype(jnp.bfloat16)
    kn1_ref[cq_pad:] = ones8.astype(jnp.bfloat16)
    qn1_ref[cq_pad:] = ones8.astype(jnp.float32)

    # eps added to the k_sum row of the small intermediate so the taylor
    # denominator falls straight out of the second attention matmul.
    row_i = jax.lax.broadcasted_iota(jnp.int32, (c + 8, cq_pad + 8), 0)
    col_i = jax.lax.broadcasted_iota(jnp.int32, (c + 8, cq_pad + 8), 1)
    eps_mask = jnp.where((row_i == c) & (col_i < cq_pad),
                         jnp.float32(EPS_ATTN), jnp.float32(0.0))

    def body(bb, carry):
        fsp = fsp_ref[bb]                     # (Csp, N) bf16
        fcp = fcp_ref[bb]                     # (Ccp, N) bf16

        # --- ConvBNReLU: split 1x1 conv (concat never materialized), BN scale
        # pre-folded into the weights, only the additive shift remains.
        pre = (jnp.dot(w1sp, fsp, preferred_element_type=jnp.float32) +
               jnp.dot(w1cp, fcp, preferred_element_type=jnp.float32))   # (C, N)
        feat = jnp.maximum(pre + bnb, 0.0)                               # f32

        # --- fused Q/K/V projection (single MXU matmul, bias folded via the
        # ones row of cn1 against the extra weight columns).
        cn1_ref[:c] = feat.astype(jnp.bfloat16)
        qkv = jnp.dot(wqkv, cn1_ref[...],
                      preferred_element_type=jnp.float32)   # (2cq_pad+C, N)
        q = qkv[:cq_pad]                                    # pad rows exactly 0
        k = qkv[cq_pad:2 * cq_pad]
        v = qkv[2 * cq_pad:]

        # --- l2-norm over channels (rsqrt -> EUP)
        qn = q * jax.lax.rsqrt(jnp.sum(q * q, axis=0, keepdims=True) + EPS_NORM)
        kn = k * jax.lax.rsqrt(jnp.sum(k * k, axis=0, keepdims=True) + EPS_NORM)

        kn1_ref[:cq_pad] = kn.astype(jnp.bfloat16)
        qn1_ref[:cq_pad] = qn                 # keep f32 (feeds the f32 2nd dot)
        cn1_ref[:c] = v.astype(jnp.bfloat16)  # reuse the feat buffer for v

        # m_big[:C,:cq_pad] = matrix^T,  m_big[:C,cq_pad] = value_sum,
        # m_big[C,:cq_pad]  = k_sum,     m_big[C,cq_pad]  = N.
        m_big = jax.lax.dot_general(
            cn1_ref[...], kn1_ref[...],
            dimension_numbers=(((1,), (1,)), ((), ())),
            preferred_element_type=jnp.float32)             # (C+8, cq_pad+8)
        m_big = m_big + eps_mask                            # k_sum + eps

        # big[:C] = matrix_sum, big[C] = taylor denominator. m_big holds
        # O(N)-scale sums, so this tiny matmul stays in f32.
        big = jnp.dot(m_big, qn1_ref[...],
                      preferred_element_type=jnp.float32)   # (C+8, N)
        weight_value = big[:c] * pl.reciprocal(big[c:c + 1], approx=True)

        atten = feat + gamma * weight_value
        out_ref[bb] = (feat * atten + feat).astype(out_ref.dtype)
        return carry

    jax.lax.fori_loop(0, bblk, body, 0, unroll=bblk <= 2)


def feature_aggregation(fsp, fcp, params, *, bblk=1):
    """fsp: (B, C_sp, H, W), fcp: (B, C_cp, H, W) float32 NCHW."""
    b, csp, h, w = fsp.shape
    ccp = fcp.shape[1]
    n = h * w
    w1, bn_scale, bn_bias, wq, bq, wk, bk, wv, bv, gamma = params
    c = w1.shape[0]
    cq = wq.shape[0]

    assert n % 128 == 0, "H*W must be a multiple of 128 for lane-dense blocks"
    assert c % 8 == 0 and csp % 8 == 0 and ccp % 8 == 0
    assert b % bblk == 0

    cq_pad = max(8, -(-cq // 8) * 8)
    rows = 2 * cq_pad + c

    def pad_rows(m, r):
        if m.shape[0] == r:
            return m
        return jnp.concatenate(
            [m, jnp.zeros((r - m.shape[0],) + m.shape[1:], m.dtype)], axis=0)

    # Fold the (inference) BN scale into the split 1x1-conv weights.
    w1sp = (w1[:, :csp] * bn_scale).astype(jnp.bfloat16)
    w1cp = (w1[:, csp:] * bn_scale).astype(jnp.bfloat16)

    # Fuse Q/K/V into one weight (Cq padded to the sublane granule) and fold
    # the biases into extra input columns matched by the scratch ones row.
    wqkv = jnp.concatenate([pad_rows(wq, cq_pad), pad_rows(wk, cq_pad), wv], 0)
    bqkv = jnp.concatenate([pad_rows(bq, cq_pad), pad_rows(bk, cq_pad), bv], 0)
    wqkv_ext = jnp.concatenate(
        [wqkv, bqkv, jnp.zeros((rows, 7), wqkv.dtype)], axis=1
    ).astype(jnp.bfloat16)                                   # (rows, C + 8)

    # bf16 activation I/O (kernel is HBM-bandwidth bound).
    fsp_r = fsp.reshape(b, csp, n).astype(jnp.bfloat16)
    fcp_r = fcp.reshape(b, ccp, n).astype(jnp.bfloat16)
    gamma_s = gamma.reshape(1).astype(jnp.float32)

    # Explicit scoped-VMEM budget: double-buffered I/O blocks + weights +
    # persistent scratch + per-image f32 intermediates, ~25% headroom.
    io_b = 2 * bblk * n * 2 * (csp + ccp + c)                  # dbl-buf bf16 act
    w_b = 2 * (c * (csp + ccp) * 2 + rows * (c + 8) * 2 + c * 4)
    scr_b = (c + 8) * n * 2 + (cq_pad + 8) * n * (2 + 4)
    itm_b = n * 4 * (2 * c + rows + 4 * cq_pad + (c + 8))
    vmem_limit = min(max(int(1.25 * (io_b + w_b + scr_b + itm_b)), 32 << 20),
                     128 << 20)

    kernel = functools.partial(fam_kernel, cq_pad=cq_pad)

    def full(shape):
        nd = len(shape)
        return pl.BlockSpec(shape, lambda i, _nd=nd: (0,) * _nd)

    out = pl.pallas_call(
        kernel,
        out_shape=jax.ShapeDtypeStruct((b, c, n), jnp.bfloat16),
        grid=(b // bblk,),
        in_specs=[
            pl.BlockSpec((bblk, csp, n), lambda i: (i, 0, 0)),
            pl.BlockSpec((bblk, ccp, n), lambda i: (i, 0, 0)),
            full((c, csp)),
            full((c, ccp)),
            full((c, 1)),
            full((rows, c + 8)),
            pl.BlockSpec(memory_space=pltpu.MemorySpace.SMEM),   # gamma scalar
        ],
        out_specs=pl.BlockSpec((bblk, c, n), lambda i: (i, 0, 0)),
        scratch_shapes=[
            pltpu.VMEM((c + 8, n), jnp.bfloat16),       # feat / v  (+ ones row)
            pltpu.VMEM((cq_pad + 8, n), jnp.bfloat16),  # kn        (+ ones row)
            pltpu.VMEM((cq_pad + 8, n), jnp.float32),   # qn        (+ ones row)
        ],
        compiler_params=pltpu.CompilerParams(
            dimension_semantics=("parallel",),
            vmem_limit_bytes=vmem_limit),
    )(fsp_r, fcp_r, w1sp, w1cp, bn_bias, wqkv_ext, gamma_s)
    return out.reshape(b, c, h, w)


def reference(fsp, fcp, params):
    """Pure-JAX f32 reference with the module's math (for correctness check)."""
    w1, bn_scale, bn_bias, wq, bq, wk, bk, wv, bv, gamma = params
    b, _, h, w = fsp.shape
    n = h * w
    fcat = jnp.concatenate([fsp, fcp], axis=1).reshape(b, -1, n)
    pre = jnp.einsum('oc,bcn->bon', w1, fcat)
    feat = jax.nn.relu(pre * bn_scale[None] + bn_bias[None])
    q = jnp.einsum('qc,bcn->bqn', wq, feat) + bq[None]
    k = jnp.einsum('qc,bcn->bqn', wk, feat) + bk[None]
    v = jnp.einsum('oc,bcn->bon', wv, feat) + bv[None]
    qn = q / jnp.linalg.norm(q, axis=1, keepdims=True)
    kn = k / jnp.linalg.norm(k, axis=1, keepdims=True)
    tailor = 1.0 / (n + jnp.einsum('bqn,bq->bn', qn, jnp.sum(kn, -1) + EPS_ATTN))
    value_sum = jnp.sum(v, -1)[..., None]
    matrix = jnp.einsum('bmn,bcn->bmc', kn, v)
    matrix_sum = value_sum + jnp.einsum('bmn,bmc->bcn', qn, matrix)
    weight_value = matrix_sum * tailor[:, None, :]
    atten = feat + gamma[0, 0] * weight_value
    out = feat * atten + feat
    return out.reshape(b, -1, h, w)


def make_params(key, in_chan, out_chan, scale=8):
    """Deterministic synthetic parameters (shapes match the PyTorch module)."""
    ks = jax.random.split(key, 10)
    cq = out_chan // scale

    def kaiming(k, shape, fan_in):  # kaiming_normal_(a=1) -> std = sqrt(1/fan_in)
        return jax.random.normal(k, shape, jnp.float32) * (1.0 / fan_in) ** 0.5

    # ConvBNReLU: 1x1 conv (no bias) + BatchNorm (inference stats, folded)
    w1 = kaiming(ks[0], (out_chan, in_chan), in_chan)
    bn_gamma = 1.0 + 0.1 * jax.random.normal(ks[1], (out_chan, 1), jnp.float32)
    bn_beta = 0.1 * jax.random.normal(ks[2], (out_chan, 1), jnp.float32)
    bn_mean = 0.1 * jax.random.normal(ks[3], (out_chan, 1), jnp.float32)
    bn_var = 0.5 + jnp.abs(jax.random.normal(ks[4], (out_chan, 1), jnp.float32))
    bn_scale = bn_gamma / jnp.sqrt(bn_var + EPS_BN)
    bn_bias = bn_beta - bn_mean * bn_scale

    # LinearAttention: query/key/value 1x1 convs (with bias), scalar gamma
    wq = kaiming(ks[5], (cq, out_chan), out_chan)
    bq = 0.01 * jax.random.normal(ks[6], (cq, 1), jnp.float32)
    wk = kaiming(ks[7], (cq, out_chan), out_chan)
    bk = 0.01 * jax.random.normal(ks[8], (cq, 1), jnp.float32)
    wv = kaiming(ks[9], (out_chan, out_chan), out_chan)
    bv = jnp.zeros((out_chan, 1), jnp.float32)
    # PyTorch inits gamma to 0 (attention branch disabled); use a nonzero value
    # so the linear-attention path is actually exercised.
    gamma = jnp.full((1, 1), 0.5, jnp.float32)
    return (w1, bn_scale, bn_bias, wq, bq, wk, bk, wv, bv, gamma)


if __name__ == "__main__":
    B, Csp, Ccp, H, W = 2, 8, 8, 16, 16
    in_chan, out_chan = Csp + Ccp, 32

    key = jax.random.PRNGKey(0)
    k_sp, k_cp, k_par = jax.random.split(key, 3)
    fsp = jax.random.normal(k_sp, (B, Csp, H, W), jnp.float32)
    fcp = jax.random.normal(k_cp, (B, Ccp, H, W), jnp.float32)
    params = make_params(k_par, in_chan, out_chan)

    out = jax.block_until_ready(feature_aggregation(fsp, fcp, params, bblk=1))
    ref = jax.block_until_ready(reference(fsp, fcp, params))

    assert out.shape == (B, out_chan, H, W)
    # bf16 activation/output I/O + bf16 MXU inputs + approx reciprocal ->
    # compare at bf16-level tolerance against the full-f32 reference.
    err = jnp.max(jnp.abs(out.astype(jnp.float32) - ref))
    assert jnp.allclose(out.astype(jnp.float32), ref, rtol=4e-2, atol=4e-2), float(err)
    print("KERNEL_OK")
</pallas_src>

<mosaic_0001>
module attributes {stable_mosaic.version = 11 : i64} {
  func.func @fam_kernel(%arg0: i32, %arg1: memref<1x8x256xbf16, #tpu.memory_space<vmem>>, %arg2: memref<1x8x256xbf16, #tpu.memory_space<vmem>>, %arg3: memref<32x8xbf16, #tpu.memory_space<vmem>>, %arg4: memref<32x8xbf16, #tpu.memory_space<vmem>>, %arg5: memref<32x1xf32, #tpu.memory_space<vmem>>, %arg6: memref<48x40xbf16, #tpu.memory_space<vmem>>, %arg7: memref<1xf32, #tpu.memory_space<smem>>, %arg8: memref<1x32x256xbf16, #tpu.memory_space<vmem>>, %arg9: memref<40x256xbf16, #tpu.memory_space<vmem>>, %arg10: memref<16x256xbf16, #tpu.memory_space<vmem>>, %arg11: memref<16x256xf32, #tpu.memory_space<vmem>>) attributes {dimension_semantics = [#tpu.dimension_semantics<parallel>], iteration_bounds = array<i64: 2>, scalar_prefetch = 0 : i64, scratch_operands = 3 : i64, tpu.core_type = #tpu.core_type<tc>, window_params = [{transform_indices = @transform_0, window_bounds = array<i64: 1, 8, 256>}, {transform_indices = @transform_1, window_bounds = array<i64: 1, 8, 256>}, {pipeline_mode = #tpu.pipeline_mode<synchronous>, transform_indices = @transform_2, window_bounds = array<i64: 32, 8>}, {pipeline_mode = #tpu.pipeline_mode<synchronous>, transform_indices = @transform_3, window_bounds = array<i64: 32, 8>}, {pipeline_mode = #tpu.pipeline_mode<synchronous>, transform_indices = @transform_4, window_bounds = array<i64: 32, 1>}, {pipeline_mode = #tpu.pipeline_mode<synchronous>, transform_indices = @transform_5, window_bounds = array<i64: 48, 40>}, {transform_indices = @transform_6, window_bounds = array<i64: 1>}, {transform_indices = @transform_7, window_bounds = array<i64: 1, 32, 256>}]} {
    %c0 = arith.constant 0 : index
    %0 = memref.load %arg7[%c0] : memref<1xf32, #tpu.memory_space<smem>>
    %c0_0 = arith.constant 0 : index
    %c0_1 = arith.constant 0 : index
    %1 = vector.load %arg3[%c0_0, %c0_1] : memref<32x8xbf16, #tpu.memory_space<vmem>>, vector<32x8xbf16>
    %c0_2 = arith.constant 0 : index
    %c0_3 = arith.constant 0 : index
    %2 = vector.load %arg4[%c0_2, %c0_3] : memref<32x8xbf16, #tpu.memory_space<vmem>>, vector<32x8xbf16>
    %c0_4 = arith.constant 0 : index
    %c0_5 = arith.constant 0 : index
    %3 = vector.load %arg5[%c0_4, %c0_5] : memref<32x1xf32, #tpu.memory_space<vmem>>, vector<32x1xf32>
    %c0_6 = arith.constant 0 : index
    %c0_7 = arith.constant 0 : index
    %4 = vector.load %arg6[%c0_6, %c0_7] : memref<48x40xbf16, #tpu.memory_space<vmem>>, vector<48x40xbf16>
    %5 = tpu.iota {dimensions = array<i32: 0>} : vector<8x256xi32>
    %c0_i32 = arith.constant 0 : i32
    %6 = vector.broadcast %c0_i32 : i32 to vector<8x256xi32>
    %7 = arith.cmpi eq, %5, %6 : vector<8x256xi32>
    %8 = arith.extui %7 : vector<8x256xi1> to vector<8x256xi32>
    %9 = arith.sitofp %8 : vector<8x256xi32> to vector<8x256xf32>
    %10 = arith.truncf %9 : vector<8x256xf32> to vector<8x256xbf16>
    %c32 = arith.constant 32 : index
    %c0_8 = arith.constant 0 : index
    %11 = vector.load %arg9[%c32, %c0_8] : memref<40x256xbf16, #tpu.memory_space<vmem>>, vector<8x256xbf16>
    tpu.vector_store %arg9[%c32, %c0_8], %10 {strides = array<i32>} : memref<40x256xbf16, #tpu.memory_space<vmem>>, vector<8x256xbf16>,
    %12 = arith.extui %7 : vector<8x256xi1> to vector<8x256xi32>
    %13 = arith.sitofp %12 : vector<8x256xi32> to vector<8x256xf32>
    %14 = arith.truncf %13 : vector<8x256xf32> to vector<8x256xbf16>
    %c8 = arith.constant 8 : index
    %c0_9 = arith.constant 0 : index
    %15 = vector.load %arg10[%c8, %c0_9] : memref<16x256xbf16, #tpu.memory_space<vmem>>, vector<8x256xbf16>
    tpu.vector_store %arg10[%c8, %c0_9], %14 {strides = array<i32>} : memref<16x256xbf16, #tpu.memory_space<vmem>>, vector<8x256xbf16>,
    %16 = arith.extui %7 : vector<8x256xi1> to vector<8x256xi32>
    %17 = arith.sitofp %16 : vector<8x256xi32> to vector<8x256xf32>
    %c8_10 = arith.constant 8 : index
    %c0_11 = arith.constant 0 : index
    %18 = vector.load %arg11[%c8_10, %c0_11] : memref<16x256xf32, #tpu.memory_space<vmem>>, vector<8x256xf32>
    tpu.vector_store %arg11[%c8_10, %c0_11], %17 {strides = array<i32>} : memref<16x256xf32, #tpu.memory_space<vmem>>, vector<8x256xf32>,
    %19 = tpu.iota {dimensions = array<i32: 0>} : vector<40x16xi32>
    %20 = tpu.iota {dimensions = array<i32: 1>} : vector<40x16xi32>
    %c32_i32 = arith.constant 32 : i32
    %21 = vector.broadcast %c32_i32 : i32 to vector<40x16xi32>
    %22 = arith.cmpi eq, %19, %21 : vector<40x16xi32>
    %c8_i32 = arith.constant 8 : i32
    %23 = vector.broadcast %c8_i32 : i32 to vector<40x16xi32>
    %24 = arith.cmpi slt, %20, %23 : vector<40x16xi32>
    %25 = arith.andi %22, %24 : vector<40x16xi1>
    %cst = arith.constant 9.99999997E-7 : f32
    %cst_12 = arith.constant 0.000000e+00 : f32
    %26 = vector.broadcast %cst : f32 to vector<40x16xf32>
    %27 = vector.broadcast %cst_12 : f32 to vector<40x16xf32>
    %28 = arith.select %25, %26, %27 : vector<40x16xi1>, vector<40x16xf32>
    %c0_i32_13 = arith.constant 0 : i32
    %29 = arith.index_cast %c0_i32_13 : i32 to index
    %c0_14 = arith.constant 0 : index
    %c0_15 = arith.constant 0 : index
    %30 = vector.load %arg1[%29, %c0_14, %c0_15] : memref<1x8x256xbf16, #tpu.memory_space<vmem>>, vector<1x8x256xbf16>
    %31 = vector.shape_cast %30 : vector<1x8x256xbf16> to vector<8x256xbf16>
    %32 = arith.index_cast %c0_i32_13 : i32 to index
    %c0_16 = arith.constant 0 : index
    %c0_17 = arith.constant 0 : index
    %33 = vector.load %arg2[%32, %c0_16, %c0_17] : memref<1x8x256xbf16, #tpu.memory_space<vmem>>, vector<1x8x256xbf16>
    %34 = vector.shape_cast %33 : vector<1x8x256xbf16> to vector<8x256xbf16>
    %cst_18 = arith.constant dense<0.000000e+00> : vector<32x256xf32>
    %35 = tpu.matmul %1, %31, %cst_18 {dimension_numbers = #tpu.dot_dimension_numbers<[1], [0], [0], [1], [0, 0, 1, 1], [], []>} : vector<32x8xbf16>, vector<8x256xbf16>, vector<32x256xf32> -> vector<32x256xf32>
    %cst_19 = arith.constant dense<0.000000e+00> : vector<32x256xf32>
    %36 = tpu.matmul %2, %34, %cst_19 {dimension_numbers = #tpu.dot_dimension_numbers<[1], [0], [0], [1], [0, 0, 1, 1], [], []>} : vector<32x8xbf16>, vector<8x256xbf16>, vector<32x256xf32> -> vector<32x256xf32>
    %37 = arith.addf %35, %36 : vector<32x256xf32>
    %38 = vector.broadcast %3 : vector<32x1xf32> to vector<32x256xf32>
    %39 = arith.addf %37, %38 : vector<32x256xf32>
    %cst_20 = arith.constant 0.000000e+00 : f32
    %40 = vector.broadcast %cst_20 : f32 to vector<32x256xf32>
    %41 = arith.maximumf %39, %40 : vector<32x256xf32>
    %42 = arith.truncf %41 : vector<32x256xf32> to vector<32x256xbf16>
    %c0_21 = arith.constant 0 : index
    %c0_22 = arith.constant 0 : index
    %43 = vector.load %arg9[%c0_21, %c0_22] : memref<40x256xbf16, #tpu.memory_space<vmem>>, vector<32x256xbf16>
    tpu.vector_store %arg9[%c0_21, %c0_22], %42 {strides = array<i32>} : memref<40x256xbf16, #tpu.memory_space<vmem>>, vector<32x256xbf16>,
    %c0_23 = arith.constant 0 : index
    %c0_24 = arith.constant 0 : index
    %44 = vector.load %arg9[%c0_23, %c0_24] : memref<40x256xbf16, #tpu.memory_space<vmem>>, vector<40x256xbf16>
    %cst_25 = arith.constant dense<0.000000e+00> : vector<48x256xf32>
    %45 = tpu.matmul %4, %44, %cst_25 {dimension_numbers = #tpu.dot_dimension_numbers<[1], [0], [0], [1], [0, 0, 1, 1], [], []>} : vector<48x40xbf16>, vector<40x256xbf16>, vector<48x256xf32> -> vector<48x256xf32>
    %46 = vector.extract_strided_slice %45 {offsets = [0, 0], sizes = [8, 256], strides = [1, 1]} : vector<48x256xf32> to vector<8x256xf32>
    %47 = vector.extract_strided_slice %45 {offsets = [8, 0], sizes = [8, 256], strides = [1, 1]} : vector<48x256xf32> to vector<8x256xf32>
    %48 = vector.extract_strided_slice %45 {offsets = [16, 0], sizes = [32, 256], strides = [1, 1]} : vector<48x256xf32> to vector<32x256xf32>
    %49 = arith.mulf %46, %46 : vector<8x256xf32>
    %cst_26 = arith.constant dense<0.000000e+00> : vector<256xf32>
    %50 = vector.multi_reduction <add>, %49, %cst_26 [0] : vector<8x256xf32> to vector<256xf32>
    %51 = vector.shape_cast %50 : vector<256xf32> to vector<1x256xf32>
    %cst_27 = arith.constant 9.99999996E-13 : f32
    %52 = vector.broadcast %cst_27 : f32 to vector<1x256xf32>
    %53 = arith.addf %51, %52 : vector<1x256xf32>
    %54 = math.rsqrt %53 : vector<1x256xf32>
    %55 = vector.broadcast %54 : vector<1x256xf32> to vector<8x256xf32>
    %56 = arith.mulf %46, %55 : vector<8x256xf32>
    %57 = arith.mulf %47, %47 : vector<8x256xf32>
    %cst_28 = arith.constant dense<0.000000e+00> : vector<256xf32>
    %58 = vector.multi_reduction <add>, %57, %cst_28 [0] : vector<8x256xf32> to vector<256xf32>
    %59 = vector.shape_cast %58 : vector<256xf32> to vector<1x256xf32>
    %cst_29 = arith.constant 9.99999996E-13 : f32
    %60 = vector.broadcast %cst_29 : f32 to vector<1x256xf32>
    %61 = arith.addf %59, %60 : vector<1x256xf32>
    %62 = math.rsqrt %61 : vector<1x256xf32>
    %63 = vector.broadcast %62 : vector<1x256xf32> to vector<8x256xf32>
    %64 = arith.mulf %47, %63 : vector<8x256xf32>
    %65 = arith.truncf %64 : vector<8x256xf32> to vector<8x256xbf16>
    %c0_30 = arith.constant 0 : index
    %c0_31 = arith.constant 0 : index
    %66 = vector.load %arg10[%c0_30, %c0_31] : memref<16x256xbf16, #tpu.memory_space<vmem>>, vector<8x256xbf16>
    tpu.vector_store %arg10[%c0_30, %c0_31], %65 {strides = array<i32>} : memref<16x256xbf16, #tpu.memory_space<vmem>>, vector<8x256xbf16>,
    %c0_32 = arith.constant 0 : index
    %c0_33 = arith.constant 0 : index
    %67 = vector.load %arg11[%c0_32, %c0_33] : memref<16x256xf32, #tpu.memory_space<vmem>>, vector<8x256xf32>
    tpu.vector_store %arg11[%c0_32, %c0_33], %56 {strides = array<i32>} : memref<16x256xf32, #tpu.memory_space<vmem>>, vector<8x256xf32>,
    %68 = arith.truncf %48 : vector<32x256xf32> to vector<32x256xbf16>
    %c0_34 = arith.constant 0 : index
    %c0_35 = arith.constant 0 : index
    %69 = vector.load %arg9[%c0_34, %c0_35] : memref<40x256xbf16, #tpu.memory_space<vmem>>, vector<32x256xbf16>
    tpu.vector_store %arg9[%c0_34, %c0_35], %68 {strides = array<i32>} : memref<40x256xbf16, #tpu.memory_space<vmem>>, vector<32x256xbf16>,
    %c0_36 = arith.constant 0 : index
    %c0_37 = arith.constant 0 : index
    %70 = vector.load %arg9[%c0_36, %c0_37] : memref<40x256xbf16, #tpu.memory_space<vmem>>, vector<40x256xbf16>
    %c0_38 = arith.constant 0 : index
    %c0_39 = arith.constant 0 : index
    %71 = vector.load %arg10[%c0_38, %c0_39] : memref<16x256xbf16, #tpu.memory_space<vmem>>, vector<16x256xbf16>
    %cst_40 = arith.constant dense<0.000000e+00> : vector<40x16xf32>
    %72 = tpu.matmul %70, %71, %cst_40 {dimension_numbers = #tpu.dot_dimension_numbers<[1], [1], [0], [0], [0, 0, 1, 0], [], []>} : vector<40x256xbf16>, vector<16x256xbf16>, vector<40x16xf32> -> vector<40x16xf32>
    %73 = arith.addf %72, %28 : vector<40x16xf32>
    %c0_41 = arith.constant 0 : index
    %c0_42 = arith.constant 0 : index
    %74 = vector.load %arg11[%c0_41, %c0_42] : memref<16x256xf32, #tpu.memory_space<vmem>>, vector<16x256xf32>
    %cst_43 = arith.constant dense<0.000000e+00> : vector<40x256xf32>
    %75 = tpu.matmul %73, %74, %cst_43 {dimension_numbers = #tpu.dot_dimension_numbers<[1], [0], [0], [1], [0, 0, 1, 1], [], []>} : vector<40x16xf32>, vector<16x256xf32>, vector<40x256xf32> -> vector<40x256xf32>
    %76 = vector.extract_strided_slice %75 {offsets = [0, 0], sizes = [32, 256], strides = [1, 1]} : vector<40x256xf32> to vector<32x256xf32>
    %77 = vector.extract_strided_slice %75 {offsets = [32, 0], sizes = [1, 256], strides = [1, 1]} : vector<40x256xf32> to vector<1x256xf32>
    %78 = tpu.reciprocal %77 {approx = true} : vector<1x256xf32> -> vector<1x256xf32>
    %79 = vector.broadcast %78 : vector<1x256xf32> to vector<32x256xf32>
    %80 = arith.mulf %76, %79 : vector<32x256xf32>
    %81 = vector.broadcast %0 : f32 to vector<32x256xf32>
    %82 = arith.mulf %81, %80 : vector<32x256xf32>
    %83 = arith.addf %41, %82 : vector<32x256xf32>
    %84 = arith.mulf %41, %83 : vector<32x256xf32>
    %85 = arith.addf %84, %41 : vector<32x256xf32>
    %86 = arith.truncf %85 : vector<32x256xf32> to vector<32x256xbf16>
    %87 = arith.index_cast %c0_i32_13 : i32 to index
    %c0_44 = arith.constant 0 : index
    %c0_45 = arith.constant 0 : index
    %88 = vector.load %arg8[%87, %c0_44, %c0_45] : memref<1x32x256xbf16, #tpu.memory_space<vmem>>, vector<1x32x256xbf16>
    %89 = vector.shape_cast %88 : vector<1x32x256xbf16> to vector<32x256xbf16>
    %90 = vector.shape_cast %86 : vector<32x256xbf16> to vector<1x32x256xbf16>
    tpu.vector_store %arg8[%87, %c0_44, %c0_45], %90 {strides = array<i32>} : memref<1x32x256xbf16, #tpu.memory_space<vmem>>, vector<1x32x256xbf16>,
    %c1_i32 = arith.constant 1 : i32
    return
  }
  func.func @transform_0(%arg0: i32) -> (i32, i32, i32) {
    %c0_i32 = arith.constant 0 : i32
    %c0_i32_0 = arith.constant 0 : i32
    %c0_i32_1 = arith.constant 0 : i32
    return %arg0, %c0_i32, %c0_i32_0 : i32, i32, i32
  }
  func.func @transform_1(%arg0: i32) -> (i32, i32, i32) {
    %c0_i32 = arith.constant 0 : i32
    %c0_i32_0 = arith.constant 0 : i32
    %c0_i32_1 = arith.constant 0 : i32
    return %arg0, %c0_i32, %c0_i32_0 : i32, i32, i32
  }
  func.func @transform_2(%arg0: i32) -> (i32, i32) {
    %c0_i32 = arith.constant 0 : i32
    %c0_i32_0 = arith.constant 0 : i32
    %c0_i32_1 = arith.constant 0 : i32
    return %c0_i32, %c0_i32_0 : i32, i32
  }
  func.func @transform_3(%arg0: i32) -> (i32, i32) {
    %c0_i32 = arith.constant 0 : i32
    %c0_i32_0 = arith.constant 0 : i32
    %c0_i32_1 = arith.constant 0 : i32
    return %c0_i32, %c0_i32_0 : i32, i32
  }
  func.func @transform_4(%arg0: i32) -> (i32, i32) {
    %c0_i32 = arith.constant 0 : i32
    %c0_i32_0 = arith.constant 0 : i32
    %c0_i32_1 = arith.constant 0 : i32
    return %c0_i32, %c0_i32_0 : i32, i32
  }
  func.func @transform_5(%arg0: i32) -> (i32, i32) {
    %c0_i32 = arith.constant 0 : i32
    %c0_i32_0 = arith.constant 0 : i32
    %c0_i32_1 = arith.constant 0 : i32
    return %c0_i32, %c0_i32_0 : i32, i32
  }
  func.func @transform_6(%arg0: i32) -> i32 {
    %c0_i32 = arith.constant 0 : i32
    %c0_i32_0 = arith.constant 0 : i32
    return %c0_i32 : i32
  }
  func.func @transform_7(%arg0: i32) -> (i32, i32, i32) {
    %c0_i32 = arith.constant 0 : i32
    %c0_i32_0 = arith.constant 0 : i32
    %c0_i32_1 = arith.constant 0 : i32
    return %arg0, %c0_i32, %c0_i32_0 : i32, i32, i32
  }
}

</mosaic_0001>

<llo_original>
// kernel: tpu_custom_call.1
$region0: #{tpu_custom_call.1}
  #allocation0 [shape = 'u32[]', space=smem, size = 0x4, offset = 0x4, fixed_abs, tag = 'smem constant byte address 0x4 - core index']
  #allocation1 [shape = 'u32[144,128]{1,0:T(1,128)}', space=vmem, size = 0x12000, scoped, tag = 'internal scratch']
  #allocation2 [shape = 'bf16[40,256]{1,0:T(8,128)(2,1)}', space=vmem, size = 0x5000, scoped, tag = 'scratch operand']
  #allocation3 [shape = 'bf16[16,256]{1,0:T(16,128)(2,1)}', space=vmem, size = 0x2000, scoped, tag = 'scratch operand']
  #allocation4 [shape = 'f32[16,256]{1,0:T(8,128)}', space=vmem, size = 0x4000, scoped, tag = 'scratch operand']
  #allocation5 [shape = 'f32[1]{0:T(128)S(6)}', space=smem, size = 0x200, scoped, tag = 'scoped memory for tpu_custom_call.1']
  %s0 = inlined_call_operand.vmem [shape: bf16[2,8,256], index: 0, kind: input, shape index: {}]
  %s1 = inlined_call_operand.vmem [shape: bf16[2,8,256], index: 1, kind: input, shape index: {}]
  %s2 = inlined_call_operand.vmem [shape: bf16[32,8], index: 2, kind: input, shape index: {}]
  %s3 = inlined_call_operand.vmem [shape: bf16[32,8], index: 3, kind: input, shape index: {}]
  %s4 = inlined_call_operand.vmem [shape: f32[32,1], index: 4, kind: input, shape index: {}]
  %s5 = inlined_call_operand.vmem [shape: bf16[48,40], index: 5, kind: input, shape index: {}]
  %s6 = inlined_call_operand.<no memory space> [shape: f32[1], index: 6, kind: input, shape index: {}]
  %s7 = inlined_call_operand.hbm [shape: bf16[2,32,256], index: 7, kind: output, shape index: {}]
  %s8 = sld [smem:[#allocation0]]
  $region61: #{tpu_custom_call.1} parent=0
    _
  %s10 = ssub.s32 1, %s8
  %s11 = scalar_select 0, %s10, %s8
  %12 = sst [smem:[#allocation5]] %s6
  $region1: #{tpu_custom_call.1} parent=0
    #allocation6 [shape = 'u8[32768]{0}', space=vmem, size = 0x8000, scoped, tag = 'output window, operand 0']
    #allocation7 [shape = 's32[2]{0}', space=sflag, size = 0x8, scoped, tag = 'scoped memory for tpu_custom_call.1']
    %13 = vsyncpa [#allocation7], 0
    %s14 = scalar_lea.sflag [#allocation7], 1
    %15 = vsyncpa %s14, 0
    loop: start=0, step=1, limit=4
    $region2: #{tpu_custom_call.1} parent=1 // loop_pre_header
      _
    $region3: #{tpu_custom_call.1} parent=1 // loop_header
      %s17 = sphi 0, %s21
      %p18 = scmp.ge.s32.totalorder %s17, 4
      %s27 = sphi 0, %s29
      %s30 = sphi 0, %s27
      %s31 = sphi 0, %s30
      %s47 = sphi 0, %s31
      %s53 = sphi 0, %s55
      %s56 = sphi 0, %s53
      %s57 = sphi 0, %s56
      %s73 = sphi 0, %s57
      %s77 = sphi 0, %s77
      %s79 = sphi 0, %s77
      %s80 = sphi 0, %s79
      %s94 = sphi 0, %s80
      %s98 = sphi 0, %s98
      %s100 = sphi 0, %s98
      %s101 = sphi 0, %s100
      %s115 = sphi 0, %s101
      %s119 = sphi 0, %s119
      %s121 = sphi 0, %s119
      %s122 = sphi 0, %s121
      %s136 = sphi 0, %s122
      %s140 = sphi 0, %s140
      %s142 = sphi 0, %s140
      %s143 = sphi 0, %s142
      %s157 = sphi 0, %s143
      %s161 = sphi 0, %s161
      %s163 = sphi 0, %s161
      %s164 = sphi 0, %s163
      %s178 = sphi 0, %s164
      %s184 = sphi 0, %s186
      %s187 = sphi 0, %s184
      %s188 = sphi 0, %s187
      %s204 = sphi 0, %s188
    $region4: #{tpu_custom_call.1} parent=1 // loop_header_branch
      %20 = sbr.rel (%p18) target = $region8
    $region5: #{tpu_custom_call.1} parent=1 // loop_body
      %s22 = ssub.s32 %s17, 1
      %s23 = ssub.s32 %s17, 2
      %s24 = sadd.s32 %s17, 1
      %s25 = ssub.s32 %s17, %s24
      %p26 = scmp.eq.s32.totalorder %s25, 0
      %s28 = sadd.s32 %s27, 1
      %s29 = scalar_select %p26, %s27, %s28
      %p32 = pneg %p26
      %p33 = scmp.eq.s32.totalorder %s17, 1
      %p34 = por %p32, %p33
      %p35 = scmp.ne.s32.totalorder %s27, %s30
      %p36 = scmp.eq.s32.totalorder %s17, 0
      %p37 = por %p35, %p36
      %p38 = scmp.ne.s32.totalorder %s27, %s30
      %p39 = scmp.eq.s32.totalorder %s22, 1
      %p40 = por %p38, %p39
      %p41 = scmp.ne.s32.totalorder %s30, %s31
      %p42 = scmp.eq.s32.totalorder %s22, 0
      %p43 = por %p41, %p42
      %p44 = scmp.ne.s32.totalorder %s30, %s31
      %p45 = scmp.eq.s32.totalorder %s23, 1
      %p46 = por %p44, %p45
      %p48 = scmp.ne.s32.totalorder %s31, %s47
      %p49 = scmp.eq.s32.totalorder %s23, 0
      %p50 = por %p48, %p49
      %s51 = ssub.s32 %s17, %s24
      %p52 = scmp.eq.s32.totalorder %s51, 0
      %s54 = sadd.s32 %s53, 1
      %s55 = scalar_select %p52, %s53, %s54
      %p58 = pneg %p52
      %p59 = scmp.eq.s32.totalorder %s17, 1
      %p60 = por %p58, %p59
      %p61 = scmp.ne.s32.totalorder %s53, %s56
      %p62 = scmp.eq.s32.totalorder %s17, 0
      %p63 = por %p61, %p62
      %p64 = scmp.ne.s32.totalorder %s53, %s56
      %p65 = scmp.eq.s32.totalorder %s22, 1
      %p66 = por %p64, %p65
      %p67 = scmp.ne.s32.totalorder %s56, %s57
      %p68 = scmp.eq.s32.totalorder %s22, 0
      %p69 = por %p67, %p68
      %p70 = scmp.ne.s32.totalorder %s56, %s57
      %p71 = scmp.eq.s32.totalorder %s23, 1
      %p72 = por %p70, %p71
      %p74 = scmp.ne.s32.totalorder %s57, %s73
      %p75 = scmp.eq.s32.totalorder %s23, 0
      %p76 = por %p74, %p75
      %s78 = sadd.s32 %s77, 1
      %p81 = scmp.eq.s32.totalorder %s17, 1
      %p82 = scmp.ne.s32.totalorder %s77, %s79
      %p83 = scmp.eq.s32.totalorder %s17, 0
      %p84 = por %p82, %p83
      %p85 = scmp.ne.s32.totalorder %s77, %s79
      %p86 = scmp.eq.s32.totalorder %s22, 1
      %p87 = por %p85, %p86
      %p88 = scmp.ne.s32.totalorder %s79, %s80
      %p89 = scmp.eq.s32.totalorder %s22, 0
      %p90 = por %p88, %p89
      %p91 = scmp.ne.s32.totalorder %s79, %s80
      %p92 = scmp.eq.s32.totalorder %s23, 1
      %p93 = por %p91, %p92
      %p95 = scmp.ne.s32.totalorder %s80, %s94
      %p96 = scmp.eq.s32.totalorder %s23, 0
      %p97 = por %p95, %p96
      %s99 = sadd.s32 %s98, 1
      %p102 = scmp.eq.s32.totalorder %s17, 1
      %p103 = scmp.ne.s32.totalorder %s98, %s100
      %p104 = scmp.eq.s32.totalorder %s17, 0
      %p105 = por %p103, %p104
      %p106 = scmp.ne.s32.totalorder %s98, %s100
      %p107 = scmp.eq.s32.totalorder %s22, 1
      %p108 = por %p106, %p107
      %p109 = scmp.ne.s32.totalorder %s100, %s101
      %p110 = scmp.eq.s32.totalorder %s22, 0
      %p111 = por %p109, %p110
      %p112 = scmp.ne.s32.totalorder %s100, %s101
      %p113 = scmp.eq.s32.totalorder %s23, 1
      %p114 = por %p112, %p113
      %p116 = scmp.ne.s32.totalorder %s101, %s115
      %p117 = scmp.eq.s32.totalorder %s23, 0
      %p118 = por %p116, %p117
      %s120 = sadd.s32 %s119, 1
      %p123 = scmp.eq.s32.totalorder %s17, 1
      %p124 = scmp.ne.s32.totalorder %s119, %s121
      %p125 = scmp.eq.s32.totalorder %s17, 0
      %p126 = por %p124, %p125
      %p127 = scmp.ne.s32.totalorder %s119, %s121
      %p128 = scmp.eq.s32.totalorder %s22, 1
      %p129 = por %p127, %p128
      %p130 = scmp.ne.s32.totalorder %s121, %s122
      %p131 = scmp.eq.s32.totalorder %s22, 0
      %p132 = por %p130, %p131
      %p133 = scmp.ne.s32.totalorder %s121, %s122
      %p134 = scmp.eq.s32.totalorder %s23, 1
      %p135 = por %p133, %p134
      %p137 = scmp.ne.s32.totalorder %s122, %s136
      %p138 = scmp.eq.s32.totalorder %s23, 0
      %p139 = por %p137, %p138
      %s141 = sadd.s32 %s140, 1
      %p144 = scmp.eq.s32.totalorder %s17, 1
      %p145 = scmp.ne.s32.totalorder %s140, %s142
      %p146 = scmp.eq.s32.totalorder %s17, 0
      %p147 = por %p145, %p146
      %p148 = scmp.ne.s32.totalorder %s140, %s142
      %p149 = scmp.eq.s32.totalorder %s22, 1
      %p150 = por %p148, %p149
      %p151 = scmp.ne.s32.totalorder %s142, %s143
      %p152 = scmp.eq.s32.totalorder %s22, 0
      %p153 = por %p151, %p152
      %p154 = scmp.ne.s32.totalorder %s142, %s143
      %p155 = scmp.eq.s32.totalorder %s23, 1
      %p156 = por %p154, %p155
      %p158 = scmp.ne.s32.totalorder %s143, %s157
      %p159 = scmp.eq.s32.totalorder %s23, 0
      %p160 = por %p158, %p159
      %s162 = sadd.s32 %s161, 1
      %p165 = scmp.eq.s32.totalorder %s17, 1
      %p166 = scmp.ne.s32.totalorder %s161, %s163
      %p167 = scmp.eq.s32.totalorder %s17, 0
      %p168 = por %p166, %p167
      %p169 = scmp.ne.s32.totalorder %s161, %s163
      %p170 = scmp.eq.s32.totalorder %s22, 1
      %p171 = por %p169, %p170
      %p172 = scmp.ne.s32.totalorder %s163, %s164
      %p173 = scmp.eq.s32.totalorder %s22, 0
      %p174 = por %p172, %p173
      %p175 = scmp.ne.s32.totalorder %s163, %s164
      %p176 = scmp.eq.s32.totalorder %s23, 1
      %p177 = por %p175, %p176
      %p179 = scmp.ne.s32.totalorder %s164, %s178
      %p180 = scmp.eq.s32.totalorder %s23, 0
      %p181 = por %p179, %p180
      %s182 = ssub.s32 %s17, %s24
      %p183 = scmp.eq.s32.totalorder %s182, 0
      %s185 = sadd.s32 %s184, 1
      %s186 = scalar_select %p183, %s184, %s185
      %p189 = pneg %p183
      %p190 = scmp.eq.s32.totalorder %s17, 1
      %p191 = por %p189, %p190
      %p192 = scmp.ne.s32.totalorder %s184, %s187
      %p193 = scmp.eq.s32.totalorder %s17, 0
      %p194 = por %p192, %p193
      %p195 = scmp.ne.s32.totalorder %s184, %s187
      %p196 = scmp.eq.s32.totalorder %s22, 1
      %p197 = por %p195, %p196
      %p198 = scmp.ne.s32.totalorder %s187, %s188
      %p199 = scmp.eq.s32.totalorder %s22, 0
      %p200 = por %p198, %p199
      %p201 = scmp.ne.s32.totalorder %s187, %s188
      %p202 = scmp.eq.s32.totalorder %s23, 1
      %p203 = por %p201, %p202
      %p205 = scmp.ne.s32.totalorder %s188, %s204
      %p206 = scmp.eq.s32.totalorder %s23, 0
      %p207 = por %p205, %p206
      %p208 = scmp.le.s32.totalorder 1, %s17
      %p209 = scmp.lt.s32.totalorder %s17, 3
      %p210 = pnand %p208, %p209
      %p211 = pneg %p210
      // Predicated region
      $region9: #{tpu_custom_call.1} parent=5 // pred_check
        _
      $region10: #{tpu_custom_call.1} parent=5 // pred_check_branch
        %213 = sbr.rel (%p210) target = $region12
      $region11: #{tpu_custom_call.1} parent=5 // pred_region
        %s214 = ssub.s32 %s17, 1
        // Predicated region
        $region13: #{tpu_custom_call.1} parent=11 // pred_check
          %p215 = pneg %p90
        $region14: #{tpu_custom_call.1} parent=11 // pred_check_branch
          %217 = sbr.rel (%p215) target = $region16
        $region15: #{tpu_custom_call.1} parent=11 // pred_region
          _
        $region16: #{tpu_custom_call.1} parent=11 // pred_fallthru
          _
        // Predicated region
        $region17: #{tpu_custom_call.1} parent=11 // pred_check
          %p218 = pneg %p111
        $region18: #{tpu_custom_call.1} parent=11 // pred_check_branch
          %220 = sbr.rel (%p218) target = $region20
        $region19: #{tpu_custom_call.1} parent=11 // pred_region
          _
        $region20: #{tpu_custom_call.1} parent=11 // pred_fallthru
          _
        // Predicated region
        $region21: #{tpu_custom_call.1} parent=11 // pred_check
          %p221 = pneg %p132
        $region22: #{tpu_custom_call.1} parent=11 // pred_check_branch
          %223 = sbr.rel (%p221) target = $region24
        $region23: #{tpu_custom_call.1} parent=11 // pred_region
          _
        $region24: #{tpu_custom_call.1} parent=11 // pred_fallthru
          _
        // Predicated region
        $region25: #{tpu_custom_call.1} parent=11 // pred_check
          %p224 = pneg %p153
        $region26: #{tpu_custom_call.1} parent=11 // pred_check_branch
          %226 = sbr.rel (%p224) target = $region28
        $region27: #{tpu_custom_call.1} parent=11 // pred_region
          _
        $region28: #{tpu_custom_call.1} parent=11 // pred_fallthru
          _
        // Predicated region
        $region29: #{tpu_custom_call.1} parent=11 // pred_check
          %p227 = pneg %p174
        $region30: #{tpu_custom_call.1} parent=11 // pred_check_branch
          %229 = sbr.rel (%p227) target = $region32
        $region31: #{tpu_custom_call.1} parent=11 // pred_region
          _
        $region32: #{tpu_custom_call.1} parent=11 // pred_fallthru
          _
      $region12: #{tpu_custom_call.1} parent=5 // pred_fallthru
        _
      %p230 = scmp.lt.s32.totalorder %s17, 2
      // Predicated region
      $region33: #{tpu_custom_call.1} parent=5 // pred_check
        %p231 = pneg %p230
      $region34: #{tpu_custom_call.1} parent=5 // pred_check_branch
        %233 = sbr.rel (%p231) target = $region36
      $region35: #{tpu_custom_call.1} parent=5 // pred_region
        // Predicated region
        $region37: #{tpu_custom_call.1} parent=35 // pred_check
          %p234 = pneg %p37
        $region38: #{tpu_custom_call.1} parent=35 // pred_check_branch
          %236 = sbr.rel (%p234) target = $region40
        $region39: #{tpu_custom_call.1} parent=35 // pred_region
          %p237 = scmp.lt.s32.totalorder %s17, 1
          %s238 = scalar_select %p237, %s17, 1
          %s239 = smul.addr %s238, 2
          %s240 = smul.addr %s239, 4
          %s241 = scalar_lea.vmem %s0, %s240
        $region40: #{tpu_custom_call.1} parent=35 // pred_fallthru
          _
        // Predicated region
        $region41: #{tpu_custom_call.1} parent=35 // pred_check
          %p242 = pneg %p63
        $region42: #{tpu_custom_call.1} parent=35 // pred_check_branch
          %244 = sbr.rel (%p242) target = $region44
        $region43: #{tpu_custom_call.1} parent=35 // pred_region
          %p245 = scmp.lt.s32.totalorder %s17, 1
          %s246 = scalar_select %p245, %s17, 1
          %s247 = smul.addr %s246, 2
          %s248 = smul.addr %s247, 4
          %s249 = scalar_lea.vmem %s1, %s248
        $region44: #{tpu_custom_call.1} parent=35 // pred_fallthru
          _
      $region36: #{tpu_custom_call.1} parent=5 // pred_fallthru
        _
      %p250 = scmp.le.s32.totalorder 1, %s17
      %p251 = scmp.lt.s32.totalorder %s17, 3
      %p252 = pnand %p250, %p251
      %p253 = pneg %p252
      // Predicated region
      $region45: #{tpu_custom_call.1} parent=5 // pred_check
        _
      $region46: #{tpu_custom_call.1} parent=5 // pred_check_branch
        %255 = sbr.rel (%p252) target = $region48
      $region47: #{tpu_custom_call.1} parent=5 // pred_region
        %s256 = ssub.s32 %s17, 1
        %p257 = scmp.lt.s32.totalorder %s22, 1
        %s258 = scalar_select %p257, %s22, 1
        %s259 = smul.addr %s258, 2
        %s260 = smul.addr %s259, 4
        %s261 = scalar_lea.vmem %s0, %s260
        %p262 = pneg %p43
        %p263 = pneg %p40
        %p264 = scmp.lt.s32.totalorder %s22, 1
        %s265 = scalar_select %p264, %s22, 1
        %s266 = smul.addr %s265, 2
        %s267 = smul.addr %s266, 4
        %s268 = scalar_lea.vmem %s1, %s267
        %p269 = pneg %p69
        %p270 = pneg %p66
        %p271 = pneg %p90
        %p272 = pneg %p87
        %p273 = pneg %p111
        %p274 = pneg %p108
        %p275 = pneg %p132
        %p276 = pneg %p129
        %p277 = pneg %p153
        %p278 = pneg %p150
        %p279 = pneg %p174
        %p280 = pneg %p171
        %p281 = pneg %p200
        %p282 = pneg %p197
        %s283 = sand.u32 %s187, 1
        %s284 = scalar_lea.sflag [#allocation7], %s283
        %s285 = sand.u32 %s187, 1
        %s286 = smul.addr %s285, 32
        %s287 = scalar_lea.vmem [#allocation6], %s286
        %p288 = scmp.lt.s32.totalorder %s22, 1
        %s289 = scalar_select %p288, %s22, 1
        %s290 = smul.addr %s289, 2
        %s291 = smul.addr %s290, 4
        %s292 = scalar_lea.vmem %s0, %s291
        %p293 = scmp.lt.s32.totalorder %s22, 1
        %s294 = scalar_select %p293, %s22, 1
        %s295 = smul.addr %s294, 2
        %s296 = smul.addr %s295, 4
        %s297 = scalar_lea.vmem %s1, %s296
        %s299 = sld [smem:[#allocation5]]
        %v300 = vld [vmem:[%s2] sm:$0xf]
        %v301 = vld [vmem:[%s2 + $0x4] sm:$0xf]
        %v302 = vld [vmem:[%s2 + $0x8] sm:$0xf]
        %v303 = vld [vmem:[%s2 + $0xc] sm:$0xf]
        %v304 = vld [vmem:[%s3] sm:$0xf]
        %v305 = vld [vmem:[%s3 + $0x4] sm:$0xf]
        %v306 = vld [vmem:[%s3 + $0x8] sm:$0xf]
        %v307 = vld [vmem:[%s3 + $0xc] sm:$0xf]
        %v308 = vld [vmem:[%s4] sm:$0xff]
        %v309 = vld [vmem:[%s4 + $0x8] sm:$0xff]
        %v310 = vld [vmem:[%s4 + $0x10] sm:$0xff]
        %v311 = vld [vmem:[%s4 + $0x18] sm:$0xff]
        %v312 = vld [vmem:[%s5] sm:$0xf]
        %v313 = vld [vmem:[%s5 + $0x4] sm:$0xf]
        %v314 = vld [vmem:[%s5 + $0x8] sm:$0xf]
        %v315 = vld [vmem:[%s5 + $0xc] sm:$0xf]
        %v316 = vld [vmem:[%s5 + $0x10] sm:$0xf]
        %v317 = vld [vmem:[%s5 + $0x14] sm:$0xf]
        %v318 = vlaneseq
        %v319 = vshrl.u32 %v318, 7
        %vm320 = vcmp.eq.s32.totalorder %v319, 0
        %v321 = vsel %vm320, 1, 0
        %v322 = vcvt.s32.f32 %v321
        %v323 = vpack.c.bf16 %v322, %v322
        %v326 = vunpack.c.l.s4 839922192
        %v327 = vunpack.c.0.s8 %v326
        %v328 = vlaneseq
        %v329 = vshrl.u32 %v328, 7
        %v330 = vsub.s32 %v327, %v329
        %v331 = vrot.slane %v323, %v330
        %333 = vst [vmem:[#allocation2 + $0x20] sm:$0xff] %v331
        %v334 = vrot.slane %v323, 4
        %336 = vst [vmem:[#allocation3] sm:$0xf0] %v334
        %337 = vst [vmem:[#allocation3 + $0x8] sm:$0xf0] %v334
        %338 = vst [vmem:[#allocation4 + $0x10] sm:$0xff] %v322
        %339 = vst [vmem:[#allocation4 + $0x18] sm:$0xff] %v322
        %v340 = vadd.s32 %v319, 8
        %v341 = vadd.s32 %v319, 16
        %v342 = vadd.s32 %v319, 24
        %v343 = vadd.s32 %v319, 32
        %v344 = vlaneseq
        %v345 = vand.u32 %v344, 127
        %vm346 = vcmp.eq.s32.totalorder %v319, 32
        %vm347 = vcmp.eq.s32.totalorder %v340, 32
        %vm348 = vcmp.eq.s32.totalorder %v341, 32
        %vm349 = vcmp.eq.s32.totalorder %v342, 32
        %vm350 = vcmp.eq.s32.totalorder %v343, 32
        %vm351 = vcmp.lt.s32.totalorder %v345, 8
        %vm352 = vmand %vm346, %vm351
        %vm353 = vmand %vm347, %vm351
        %vm354 = vmand %vm348, %vm351
        %vm355 = vmand %vm349, %vm351
        %vm356 = vmand %vm350, %vm351
        %v357 = vsel %vm352, 1e-06, 0.0
        %v358 = vsel %vm353, 1e-06, 0.0
        %v359 = vsel %vm354, 1e-06, 0.0
        %v360 = vsel %vm355, 1e-06, 0.0
        %v361 = vsel %vm356, 1e-06, 0.0
        %v362 = vld [vmem:[%s292] sm:$0xff]
        %v363 = vld [vmem:[%s297] sm:$0xff]
        %v368 = vunpack.c.l.b16 %v304
        %v369 = vunpack.c.l.b16 %v305
        %v370 = vunpack.c.l.b16 %v306
        %v371 = vunpack.c.l.b16 %v307
        %v372 = vpack.c.b16 %v369, %v368
        %v373 = vpack.c.b16 %v371, %v370
        %v375 = vunpack.c.l.b16 %v363
        %v376 = vunpack.c.h.b16 %v363
        %v377 = vpack.c.b16 %v375, %v375
        %v378 = vpack.c.b16 %v376, %v376
        %vm379 = vcmask 64512
        %v381 = vsel %vm379, %v372, 0
        %v384 = vsel %vm379, %v373, 0
        %vm386 = vcmask 1043456
        %v388 = vsel %vm386, %v377, 0
        %v391 = vsel %vm386, %v378, 0
        %393 = vmatprep.subr.bf16.mxu0 %v391
        %394 = vmatpush1.bf16.msra.mxu0 %v388
        %395 = vmatprep.subr.bf16.mxu0 0
        %396 = vmatpush1.bf16.msra.mxu0 0
        %397 = vmatprep.subr.bf16.mxu0 0
        %398 = vmatpush1.bf16.msra.mxu0 0
        %399 = vmatprep.subr.bf16.mxu0 0
        %400 = vmatpush1.bf16.msra.mxu0 0
        %401 = vmatprep.subr.bf16.mxu0 0
        %402 = vmatpush1.bf16.msra.mxu0 0
        %403 = vmatprep.subr.bf16.mxu0 0
        %404 = vmatpush1.bf16.msra.mxu0 0
        %405 = vmatprep.subr.bf16.mxu0 0
        %406 = vmatpush1.bf16.msra.mxu0 0
        %407 = vmatprep.subr.bf16.mxu0 0
        %408 = vmatpush1.bf16.msra.mxu0 0
        %409 = vmatprep.subr.bf16.mxu0 0
        %410 = vmatpush1.bf16.msra.mxu0 0
        %411 = vmatprep.subr.bf16.mxu0 0
        %412 = vmatpush1.bf16.msra.mxu0 0
        %413 = vmatprep.subr.bf16.mxu0 0
        %414 = vmatpush1.bf16.msra.mxu0 0
        %415 = vmatprep.subr.bf16.mxu0 0
        %416 = vmatpush1.bf16.msra.mxu0 0
        %417 = vmatprep.subr.bf16.mxu0 0
        %418 = vmatpush1.bf16.msra.mxu0 0
        %419 = vmatprep.subr.bf16.mxu0 0
        %420 = vmatpush1.bf16.msra.mxu0 0
        %421 = vmatprep.subr.bf16.mxu0 0
        %422 = vmatpush1.bf16.msra.mxu0 0
        %423 = vmatprep.subr.bf16.mxu0 0
        %424 = vmatpush1.bf16.msra.mxu0 0
        %425 = vmatprep.mubr.bf16.mxu0 0
        %426 = vmatmul.mubr.bf16.gmra.mrb[0].mxu0 %v381
        %v427 = vpop.f32.mrb[0].mxu0
        %v428 = vadd.f32 0.0, %v427
        %v429 = vpop.f32.mrb[0].mxu0
        %v430 = vadd.f32 0.0, %v429
        %v431 = vpop.f32.mrb[0].mxu0
        %v432 = vadd.f32 0.0, %v431
        %v433 = vpop.f32.mrb[0].mxu0
        %v434 = vadd.f32 0.0, %v433
        %435 = vmatprep.mubr.bf16.mxu0 0
        %436 = vmatmul.mubr.bf16.gmra.mrb[0].mxu0 %v384
        %v437 = vpop.f32.mrb[0].mxu0
        %v438 = vadd.f32 0.0, %v437
        %v439 = vpop.f32.mrb[0].mxu0
        %v440 = vadd.f32 0.0, %v439
        %v441 = vpop.f32.mrb[0].mxu0
        %v442 = vadd.f32 0.0, %v441
        %v443 = vpop.f32.mrb[0].mxu0
        %v444 = vadd.f32 0.0, %v443
        %445 = vdwg.mxu0
        %v450 = vunpack.c.l.b16 %v300
        %v451 = vunpack.c.l.b16 %v301
        %v452 = vunpack.c.l.b16 %v302
        %v453 = vunpack.c.l.b16 %v303
        %v454 = vpack.c.b16 %v451, %v450
        %v455 = vpack.c.b16 %v453, %v452
        %v457 = vunpack.c.l.b16 %v362
        %v458 = vunpack.c.h.b16 %v362
        %v459 = vpack.c.b16 %v457, %v457
        %v460 = vpack.c.b16 %v458, %v458
        %v462 = vsel %vm379, %v454, 0
        %v465 = vsel %vm379, %v455, 0
        %v468 = vsel %vm386, %v459, 0
        %v471 = vsel %vm386, %v460, 0
        %473 = vmatprep.subr.bf16.mxu0 %v471
        %474 = vmatpush1.bf16.msra.mxu0 %v468
        %475 = vmatprep.subr.bf16.mxu0 0
        %476 = vmatpush1.bf16.msra.mxu0 0
        %477 = vmatprep.subr.bf16.mxu0 0
        %478 = vmatpush1.bf16.msra.mxu0 0
        %479 = vmatprep.subr.bf16.mxu0 0
        %480 = vmatpush1.bf16.msra.mxu0 0
        %481 = vmatprep.subr.bf16.mxu0 0
        %482 = vmatpush1.bf16.msra.mxu0 0
        %483 = vmatprep.subr.bf16.mxu0 0
        %484 = vmatpush1.bf16.msra.mxu0 0
        %485 = vmatprep.subr.bf16.mxu0 0
        %486 = vmatpush1.bf16.msra.mxu0 0
        %487 = vmatprep.subr.bf16.mxu0 0
        %488 = vmatpush1.bf16.msra.mxu0 0
        %489 = vmatprep.subr.bf16.mxu0 0
        %490 = vmatpush1.bf16.msra.mxu0 0
        %491 = vmatprep.subr.bf16.mxu0 0
        %492 = vmatpush1.bf16.msra.mxu0 0
        %493 = vmatprep.subr.bf16.mxu0 0
        %494 = vmatpush1.bf16.msra.mxu0 0
        %495 = vmatprep.subr.bf16.mxu0 0
        %496 = vmatpush1.bf16.msra.mxu0 0
        %497 = vmatprep.subr.bf16.mxu0 0
        %498 = vmatpush1.bf16.msra.mxu0 0
        %499 = vmatprep.subr.bf16.mxu0 0
        %500 = vmatpush1.bf16.msra.mxu0 0
        %501 = vmatprep.subr.bf16.mxu0 0
        %502 = vmatpush1.bf16.msra.mxu0 0
        %503 = vmatprep.subr.bf16.mxu0 0
        %504 = vmatpush1.bf16.msra.mxu0 0
        %505 = vmatprep.mubr.bf16.mxu0 0
        %506 = vmatmul.mubr.bf16.gmra.mrb[0].mxu0 %v462
        %v507 = vpop.f32.mrb[0].mxu0
        %v508 = vadd.f32 %v428, %v507
        %v509 = vpop.f32.mrb[0].mxu0
        %v510 = vadd.f32 %v430, %v509
        %v511 = vpop.f32.mrb[0].mxu0
        %v512 = vadd.f32 %v432, %v511
        %v513 = vpop.f32.mrb[0].mxu0
        %v514 = vadd.f32 %v434, %v513
        %515 = vmatprep.mubr.bf16.mxu0 0
        %516 = vmatmul.mubr.bf16.gmra.mrb[0].mxu0 %v465
        %v517 = vpop.f32.mrb[0].mxu0
        %v518 = vadd.f32 %v438, %v517
        %v519 = vpop.f32.mrb[0].mxu0
        %v520 = vadd.f32 %v440, %v519
        %v521 = vpop.f32.mrb[0].mxu0
        %v522 = vadd.f32 %v442, %v521
        %v523 = vpop.f32.mrb[0].mxu0
        %v524 = vadd.f32 %v444, %v523
        %525 = vdwg.mxu0
        %527 = vset.pattern.permute.xlu0 0
        %528 = vperm.xlu0 %527, %v308
        %v529 = vpop.permute.xlu0 %528
        %532 = vset.pattern.permute.xlu0 0
        %533 = vperm.xlu0 %532, %v309
        %v534 = vpop.permute.xlu0 %533
        %537 = vset.pattern.permute.xlu0 0
        %538 = vperm.xlu0 %537, %v310
        %v539 = vpop.permute.xlu0 %538
        %542 = vset.pattern.permute.xlu0 0
        %543 = vperm.xlu0 %542, %v311
        %v544 = vpop.permute.xlu0 %543
        %v546 = vadd.f32 %v508, %v529
        %v547 = vadd.f32 %v510, %v529
        %v548 = vadd.f32 %v512, %v534
        %v549 = vadd.f32 %v514, %v534
        %v550 = vadd.f32 %v518, %v539
        %v551 = vadd.f32 %v520, %v539
        %v552 = vadd.f32 %v522, %v544
        %v553 = vadd.f32 %v524, %v544
        %v554 = vmax.f32 %v546, 0.0
        %v555 = vmax.f32 %v547, 0.0
        %v556 = vmax.f32 %v548, 0.0
        %v557 = vmax.f32 %v549, 0.0
        %v558 = vmax.f32 %v550, 0.0
        %v559 = vmax.f32 %v551, 0.0
        %v560 = vmax.f32 %v552, 0.0
        %v561 = vmax.f32 %v553, 0.0
        %v562 = vpack.c.bf16 %v556, %v554
        %v563 = vpack.c.bf16 %v557, %v555
        %v564 = vpack.c.bf16 %v560, %v558
        %v565 = vpack.c.bf16 %v561, %v559
        %v570 = vunpack.c.l.b16 %v562
        %v571 = vunpack.c.l.b16 %v563
        %v572 = vunpack.c.h.b16 %v562
        %v573 = vunpack.c.h.b16 %v563
        %v574 = vunpack.c.l.b16 %v564
        %v575 = vunpack.c.l.b16 %v565
        %v576 = vunpack.c.h.b16 %v564
        %v577 = vunpack.c.h.b16 %v565
        %v578 = vpack.c.b16 %v571, %v570
        %v579 = vpack.c.b16 %v573, %v572
        %v580 = vpack.c.b16 %v575, %v574
        %v581 = vpack.c.b16 %v577, %v576
        %586 = vst [vmem:[#allocation2] sm:$0xff] %v578
        %587 = vst [vmem:[#allocation2 + $0x8] sm:$0xff] %v579
        %588 = vst [vmem:[#allocation2 + $0x10] sm:$0xff] %v580
        %589 = vst [vmem:[#allocation2 + $0x18] sm:$0xff] %v581
        %v590 = vld [vmem:[#allocation2] sm:$0xff]
        %v591 = vld [vmem:[#allocation2 + $0x8] sm:$0xff]
        %v592 = vld [vmem:[#allocation2 + $0x10] sm:$0xff]
        %v593 = vld [vmem:[#allocation2 + $0x18] sm:$0xff]
        %v594 = vld [vmem:[#allocation2 + $0x20] sm:$0xff]
        %v601 = vunpack.c.l.b16 %v312
        %v602 = vunpack.c.l.b16 %v313
        %v603 = vunpack.c.l.b16 %v314
        %v604 = vunpack.c.l.b16 %v315
        %v605 = vunpack.c.l.b16 %v316
        %v606 = vunpack.c.l.b16 %v317
        %v607 = vpack.c.b16 %v602, %v601
        %v608 = vpack.c.b16 %v604, %v603
        %v609 = vpack.c.b16 %v606, %v605
        %v615 = vunpack.c.l.b16 %v590
        %v616 = vunpack.c.h.b16 %v590
        %v617 = vunpack.c.l.b16 %v591
        %v618 = vunpack.c.h.b16 %v591
        %v619 = vunpack.c.l.b16 %v592
        %v620 = vunpack.c.h.b16 %v592
        %v621 = vunpack.c.l.b16 %v593
        %v622 = vunpack.c.h.b16 %v593
        %v623 = vunpack.c.l.b16 %v594
        %v624 = vunpack.c.h.b16 %v594
        %v625 = vpack.c.b16 %v617, %v615
        %v626 = vpack.c.b16 %v618, %v616
        %v627 = vpack.c.b16 %v621, %v619
        %v628 = vpack.c.b16 %v622, %v620
        %v629 = vpack.c.b16 %v623, %v623
        %v630 = vpack.c.b16 %v624, %v624
        %vm635 = vcmask 326656
        %v637 = vsel %vm635, %v607, 0
        %v640 = vsel %vm635, %v608, 0
        %v643 = vsel %vm635, %v609, 0
        %v646 = vsel %vm386, %v629, 0
        %v649 = vsel %vm386, %v630, 0
        %651 = vmatprep.subr.bf16.mxu0 %v626
        %652 = vmatpush1.bf16.msra.mxu0 %v625
        %653 = vmatprep.subr.bf16.mxu0 %v628
        %654 = vmatpush1.bf16.msra.mxu0 %v627
        %655 = vmatprep.subr.bf16.mxu0 %v649
        %656 = vmatpush1.bf16.msra.mxu0 %v646
        %657 = vmatprep.subr.bf16.mxu0 0
        %658 = vmatpush1.bf16.msra.mxu0 0
        %659 = vmatprep.subr.bf16.mxu0 0
        %660 = vmatpush1.bf16.msra.mxu0 0
        %661 = vmatprep.subr.bf16.mxu0 0
        %662 = vmatpush1.bf16.msra.mxu0 0
        %663 = vmatprep.subr.bf16.mxu0 0
        %664 = vmatpush1.bf16.msra.mxu0 0
        %665 = vmatprep.subr.bf16.mxu0 0
        %666 = vmatpush1.bf16.msra.mxu0 0
        %667 = vmatprep.subr.bf16.mxu0 0
        %668 = vmatpush1.bf16.msra.mxu0 0
        %669 = vmatprep.subr.bf16.mxu0 0
        %670 = vmatpush1.bf16.msra.mxu0 0
        %671 = vmatprep.subr.bf16.mxu0 0
        %672 = vmatpush1.bf16.msra.mxu0 0
        %673 = vmatprep.subr.bf16.mxu0 0
        %674 = vmatpush1.bf16.msra.mxu0 0
        %675 = vmatprep.subr.bf16.mxu0 0
        %676 = vmatpush1.bf16.msra.mxu0 0
        %677 = vmatprep.subr.bf16.mxu0 0
        %678 = vmatpush1.bf16.msra.mxu0 0
        %679 = vmatprep.subr.bf16.mxu0 0
        %680 = vmatpush1.bf16.msra.mxu0 0
        %681 = vmatprep.subr.bf16.mxu0 0
        %682 = vmatpush1.bf16.msra.mxu0 0
        %683 = vmatprep.mubr.bf16.mxu0 0
        %684 = vmatmul.mubr.bf16.gmra.mrb[0].mxu0 %v637
        %v685 = vpop.f32.mrb[0].mxu0
        %v686 = vadd.f32 0.0, %v685
        %v687 = vpop.f32.mrb[0].mxu0
        %v688 = vadd.f32 0.0, %v687
        %v689 = vpop.f32.mrb[0].mxu0
        %v690 = vadd.f32 0.0, %v689
        %v691 = vpop.f32.mrb[0].mxu0
        %v692 = vadd.f32 0.0, %v691
        %693 = vmatprep.mubr.bf16.mxu0 0
        %694 = vmatmul.mubr.bf16.gmra.mrb[0].mxu0 %v640
        %v695 = vpop.f32.mrb[0].mxu0
        %v696 = vadd.f32 0.0, %v695
        %v697 = vpop.f32.mrb[0].mxu0
        %v698 = vadd.f32 0.0, %v697
        %v699 = vpop.f32.mrb[0].mxu0
        %v700 = vadd.f32 0.0, %v699
        %v701 = vpop.f32.mrb[0].mxu0
        %v702 = vadd.f32 0.0, %v701
        %703 = vmatprep.mubr.bf16.mxu0 0
        %704 = vmatmul.mubr.bf16.gmra.mrb[0].mxu0 %v643
        %v705 = vpop.f32.mrb[0].mxu0
        %v706 = vadd.f32 0.0, %v705
        %v707 = vpop.f32.mrb[0].mxu0
        %v708 = vadd.f32 0.0, %v707
        %v709 = vpop.f32.mrb[0].mxu0
        %v710 = vadd.f32 0.0, %v709
        %v711 = vpop.f32.mrb[0].mxu0
        %v712 = vadd.f32 0.0, %v711
        %713 = vdwg.mxu0
        %v714 = vmul.f32 %v686, %v686
        %v715 = vmul.f32 %v688, %v688
        %v716 = vrot.slane %v714, 4
        %v717 = vadd.f32 %v714, %v716
        %v718 = vrot.slane %v717, 2
        %v719 = vadd.f32 %v717, %v718
        %v720 = vrot.slane %v719, 1
        %v721 = vadd.f32 %v719, %v720
        %v722 = vrot.slane %v715, 4
        %v723 = vadd.f32 %v715, %v722
        %v724 = vrot.slane %v723, 2
        %v725 = vadd.f32 %v723, %v724
        %v726 = vrot.slane %v725, 1
        %v727 = vadd.f32 %v725, %v726
        %v728 = vadd.f32 %v721, 1e-12
        %v729 = vadd.f32 %v727, 1e-12
        %v730 = vrsqrt.pop %v728
        %v731 = vrsqrt.pop %v729
        %v732 = vmul.f32 %v686, %v730
        %v733 = vmul.f32 %v688, %v731
        %v734 = vmul.f32 %v690, %v690
        %v735 = vmul.f32 %v692, %v692
        %v736 = vrot.slane %v734, 4
        %v737 = vadd.f32 %v734, %v736
        %v738 = vrot.slane %v737, 2
        %v739 = vadd.f32 %v737, %v738
        %v740 = vrot.slane %v739, 1
        %v741 = vadd.f32 %v739, %v740
        %v742 = vrot.slane %v735, 4
        %v743 = vadd.f32 %v735, %v742
        %v744 = vrot.slane %v743, 2
        %v745 = vadd.f32 %v743, %v744
        %v746 = vrot.slane %v745, 1
        %v747 = vadd.f32 %v745, %v746
        %v748 = vadd.f32 %v741, 1e-12
        %v749 = vadd.f32 %v747, 1e-12
        %v750 = vrsqrt.pop %v748
        %v751 = vrsqrt.pop %v749
        %v752 = vmul.f32 %v690, %v750
        %v753 = vmul.f32 %v692, %v751
        %v754 = vpack.c.bf16 %v752, %v752
        %v755 = vpack.c.bf16 %v753, %v753
        %756 = vst [vmem:[#allocation3] sm:$0xf] %v754
        %757 = vst [vmem:[#allocation3 + $0x8] sm:$0xf] %v755
        %758 = vst [vmem:[#allocation4] sm:$0xff] %v732
        %759 = vst [vmem:[#allocation4 + $0x8] sm:$0xff] %v733
        %v760 = vpack.c.bf16 %v700, %v696
        %v761 = vpack.c.bf16 %v702, %v698
        %v762 = vpack.c.bf16 %v710, %v706
        %v763 = vpack.c.bf16 %v712, %v708
        %v768 = vunpack.c.l.b16 %v760
        %v769 = vunpack.c.l.b16 %v761
        %v770 = vunpack.c.h.b16 %v760
        %v771 = vunpack.c.h.b16 %v761
        %v772 = vunpack.c.l.b16 %v762
        %v773 = vunpack.c.l.b16 %v763
        %v774 = vunpack.c.h.b16 %v762
        %v775 = vunpack.c.h.b16 %v763
        %v776 = vpack.c.b16 %v769, %v768
        %v777 = vpack.c.b16 %v771, %v770
        %v778 = vpack.c.b16 %v773, %v772
        %v779 = vpack.c.b16 %v775, %v774
        %784 = vst [vmem:[#allocation2] sm:$0xff] %v776
        %785 = vst [vmem:[#allocation2 + $0x8] sm:$0xff] %v777
        %786 = vst [vmem:[#allocation2 + $0x10] sm:$0xff] %v778
        %787 = vst [vmem:[#allocation2 + $0x18] sm:$0xff] %v779
        %v788 = vld [vmem:[#allocation2] sm:$0xff]
        %v789 = vld [vmem:[#allocation2 + $0x8] sm:$0xff]
        %v790 = vld [vmem:[#allocation2 + $0x10] sm:$0xff]
        %v791 = vld [vmem:[#allocation2 + $0x18] sm:$0xff]
        %v792 = vld [vmem:[#allocation2 + $0x20] sm:$0xff]
        %v793 = vld [vmem:[#allocation3] sm:$0xff]
        %v794 = vld [vmem:[#allocation3 + $0x8] sm:$0xff]
        %v800 = vunpack.c.l.b16 %v788
        %v801 = vunpack.c.h.b16 %v788
        %v802 = vunpack.c.l.b16 %v789
        %v803 = vunpack.c.h.b16 %v789
        %v804 = vunpack.c.l.b16 %v790
        %v805 = vunpack.c.h.b16 %v790
        %v806 = vunpack.c.l.b16 %v791
        %v807 = vunpack.c.h.b16 %v791
        %v808 = vunpack.c.l.b16 %v792
        %v809 = vunpack.c.h.b16 %v792
        %v810 = vpack.c.b16 %v802, %v800
        %v811 = vpack.c.b16 %v803, %v801
        %v812 = vpack.c.b16 %v806, %v804
        %v813 = vpack.c.b16 %v807, %v805
        %v814 = vpack.c.b16 %v808, %v808
        %v815 = vpack.c.b16 %v809, %v809
        %822 = vmatprep.subr.bf16.mxu0 %v794
        %823 = vmatpush1.bf16.xpose.msra.mxu0 %v793
        %824 = vmatprep.subr.bf16.mxu0 0
        %825 = vmatpush1.bf16.xpose.msra.mxu0 0
        %826 = vmatprep.subr.bf16.mxu0 0
        %827 = vmatpush1.bf16.xpose.msra.mxu0 0
        %828 = vmatprep.subr.bf16.mxu0 0
        %829 = vmatpush1.bf16.xpose.msra.mxu0 0
        %830 = vmatprep.subr.bf16.mxu0 0
        %831 = vmatpush1.bf16.xpose.msra.mxu0 0
        %832 = vmatprep.subr.bf16.mxu0 0
        %833 = vmatpush1.bf16.xpose.msra.mxu0 0
        %834 = vmatprep.subr.bf16.mxu0 0
        %835 = vmatpush1.bf16.xpose.msra.mxu0 0
        %836 = vmatprep.subr.bf16.mxu0 0
        %837 = vmatpush1.bf16.xpose.msra.mxu0 0
        %838 = vmatprep.subr.bf16.mxu0 0
        %839 = vmatpush1.bf16.xpose.msra.mxu0 0
        %840 = vmatprep.subr.bf16.mxu0 0
        %841 = vmatpush1.bf16.xpose.msra.mxu0 0
        %842 = vmatprep.subr.bf16.mxu0 0
        %843 = vmatpush1.bf16.xpose.msra.mxu0 0
        %844 = vmatprep.subr.bf16.mxu0 0
        %845 = vmatpush1.bf16.xpose.msra.mxu0 0
        %846 = vmatprep.subr.bf16.mxu0 0
        %847 = vmatpush1.bf16.xpose.msra.mxu0 0
        %848 = vmatprep.subr.bf16.mxu0 0
        %849 = vmatpush1.bf16.xpose.msra.mxu0 0
        %850 = vmatprep.subr.bf16.mxu0 0
        %851 = vmatpush1.bf16.xpose.msra.mxu0 0
        %852 = vmatprep.subr.bf16.mxu0 0
        %853 = vmatpush1.bf16.xpose.msra.mxu0 0
        %854 = vmatprep.mubr.bf16.mxu0 %v811
        %855 = vmatmul.mubr.bf16.gmra.mrb[0].mxu0 %v810
        %v856 = vpop.f32.mrb[0].mxu0
        %v857 = vadd.f32 %v357, %v856
        %v858 = vpop.f32.mrb[0].mxu0
        %v859 = vpop.f32.mrb[0].mxu0
        %v860 = vadd.f32 %v358, %v859
        %v861 = vpop.f32.mrb[0].mxu0
        %862 = vmatprep.mubr.bf16.mxu0 %v813
        %863 = vmatmul.mubr.bf16.gmra.mrb[0].mxu0 %v812
        %v864 = vpop.f32.mrb[0].mxu0
        %v865 = vadd.f32 %v359, %v864
        %v866 = vpop.f32.mrb[0].mxu0
        %v867 = vpop.f32.mrb[0].mxu0
        %v868 = vadd.f32 %v360, %v867
        %v869 = vpop.f32.mrb[0].mxu0
        %870 = vmatprep.mubr.bf16.mxu0 %v815
        %871 = vmatmul.mubr.bf16.gmra.mrb[0].mxu0 %v814
        %v872 = vpop.f32.mrb[0].mxu0
        %v873 = vadd.f32 %v361, %v872
        %v874 = vpop.f32.mrb[0].mxu0
        %v875 = vpop.f32.mrb[0].mxu0
        %v876 = vpop.f32.mrb[0].mxu0
        %877 = vdwg.mxu0
        %v878 = vld [vmem:[#allocation4] sm:$0xff]
        %v879 = vld [vmem:[#allocation4 + $0x8] sm:$0xff]
        %v880 = vld [vmem:[#allocation4 + $0x10] sm:$0xff]
        %v881 = vld [vmem:[#allocation4 + $0x18] sm:$0xff]
        %vm882 = vcmask 130048
        %v884 = vsel %vm882, %v857, 0
        %v887 = vsel %vm882, %v860, 0
        %v890 = vsel %vm882, %v865, 0
        %v893 = vsel %vm882, %v868, 0
        %v896 = vsel %vm882, %v873, 0
        %898 = vmatprep.subr.mxu0 %v879
        %899 = vmatpush1.msra.mxu0 %v878
        %900 = vmatprep.subr.mxu0 %v881
        %901 = vmatpush1.msra.mxu0 %v880
        %902 = vmatprep.subr.mxu0 0.0
        %903 = vmatpush1.msra.mxu0 0.0
        %904 = vmatprep.subr.mxu0 0.0
        %905 = vmatpush1.msra.mxu0 0.0
        %906 = vmatprep.subr.mxu0 0.0
        %907 = vmatpush1.msra.mxu0 0.0
        %908 = vmatprep.subr.mxu0 0.0
        %909 = vmatpush1.msra.mxu0 0.0
        %910 = vmatprep.subr.mxu0 0.0
        %911 = vmatpush1.msra.mxu0 0.0
        %912 = vmatprep.subr.mxu0 0.0
        %913 = vmatpush1.msra.mxu0 0.0
        %914 = vmatprep.subr.mxu0 0.0
        %915 = vmatpush1.msra.mxu0 0.0
        %916 = vmatprep.subr.mxu0 0.0
        %917 = vmatpush1.msra.mxu0 0.0
        %918 = vmatprep.subr.mxu0 0.0
        %919 = vmatpush1.msra.mxu0 0.0
        %920 = vmatprep.subr.mxu0 0.0
        %921 = vmatpush1.msra.mxu0 0.0
        %922 = vmatprep.subr.mxu0 0.0
        %923 = vmatpush1.msra.mxu0 0.0
        %924 = vmatprep.subr.mxu0 0.0
        %925 = vmatpush1.msra.mxu0 0.0
        %926 = vmatprep.subr.mxu0 0.0
        %927 = vmatpush1.msra.mxu0 0.0
        %928 = vmatprep.subr.mxu0 0.0
        %929 = vmatpush1.msra.mxu0 0.0
        %930 = vmatprep.subr.mxu0 0.0
        %931 = vmatpush1.msra.mxu0 0.0
        %932 = vmatprep.subr.mxu0 0.0
        %933 = vmatpush1.msra.mxu0 0.0
        %934 = vmatprep.subr.mxu0 0.0
        %935 = vmatpush1.msra.mxu0 0.0
        %936 = vmatprep.subr.mxu0 0.0
        %937 = vmatpush1.msra.mxu0 0.0
        %938 = vmatprep.subr.mxu0 0.0
        %939 = vmatpush1.msra.mxu0 0.0
        %940 = vmatprep.subr.mxu0 0.0
        %941 = vmatpush1.msra.mxu0 0.0
        %942 = vmatprep.subr.mxu0 0.0
        %943 = vmatpush1.msra.mxu0 0.0
        %944 = vmatprep.subr.mxu0 0.0
        %945 = vmatpush1.msra.mxu0 0.0
        %946 = vmatprep.subr.mxu0 0.0
        %947 = vmatpush1.msra.mxu0 0.0
        %948 = vmatprep.subr.mxu0 0.0
        %949 = vmatpush1.msra.mxu0 0.0
        %950 = vmatprep.subr.mxu0 0.0
        %951 = vmatpush1.msra.mxu0 0.0
        %952 = vmatprep.subr.mxu0 0.0
        %953 = vmatpush1.msra.mxu0 0.0
        %954 = vmatprep.subr.mxu0 0.0
        %955 = vmatpush1.msra.mxu0 0.0
        %956 = vmatprep.subr.mxu0 0.0
        %957 = vmatpush1.msra.mxu0 0.0
        %958 = vmatprep.subr.mxu0 0.0
        %959 = vmatpush1.msra.mxu0 0.0
        %960 = vmatprep.subr.mxu0 0.0
        %961 = vmatpush1.msra.mxu0 0.0
        %962 = vmatprep.mubr.f32.mxu0 0.0
        %963 = vmatmul.mubr.f32.gmra.mrb[0].mxu0 %v884
        %v964 = vpop.f32.mrb[0].mxu0
        %v965 = vadd.f32 0.0, %v964
        %v966 = vpop.f32.mrb[0].mxu0
        %v967 = vadd.f32 0.0, %v966
        %968 = vmatprep.mubr.f32.mxu0 0.0
        %969 = vmatmul.mubr.f32.gmra.mrb[0].mxu0 %v887
        %v970 = vpop.f32.mrb[0].mxu0
        %v971 = vadd.f32 0.0, %v970
        %v972 = vpop.f32.mrb[0].mxu0
        %v973 = vadd.f32 0.0, %v972
        %974 = vmatprep.mubr.f32.mxu0 0.0
        %975 = vmatmul.mubr.f32.gmra.mrb[0].mxu0 %v890
        %v976 = vpop.f32.mrb[0].mxu0
        %v977 = vadd.f32 0.0, %v976
        %v978 = vpop.f32.mrb[0].mxu0
        %v979 = vadd.f32 0.0, %v978
        %980 = vmatprep.mubr.f32.mxu0 0.0
        %981 = vmatmul.mubr.f32.gmra.mrb[0].mxu0 %v893
        %v982 = vpop.f32.mrb[0].mxu0
        %v983 = vadd.f32 0.0, %v982
        %v984 = vpop.f32.mrb[0].mxu0
        %v985 = vadd.f32 0.0, %v984
        %986 = vmatprep.mubr.f32.mxu0 0.0
        %987 = vmatmul.mubr.f32.gmra.mrb[0].mxu0 %v896
        %v988 = vpop.f32.mrb[0].mxu0
        %v989 = vadd.f32 0.0, %v988
        %v990 = vpop.f32.mrb[0].mxu0
        %v991 = vadd.f32 0.0, %v990
        %992 = vdwg.mxu0
        %v993 = vrcp.pop %v989
        %v994 = vrcp.pop %v991
        %v995 = vlaneseq
        %v996 = vshrl.u32 %v995, 7
        %v997 = vsub.s32 0, %v996
        %v998 = vrot.slane %v993, %v997
        %v999 = vlaneseq
        %v1000 = vshrl.u32 %v999, 7
        %v1001 = vsub.s32 0, %v1000
        %v1002 = vrot.slane %v994, %v1001
        %v1003 = vmul.f32 %v965, %v998
        %v1004 = vmul.f32 %v967, %v1002
        %v1005 = vmul.f32 %v971, %v998
        %v1006 = vmul.f32 %v973, %v1002
        %v1007 = vmul.f32 %v977, %v998
        %v1008 = vmul.f32 %v979, %v1002
        %v1009 = vmul.f32 %v983, %v998
        %v1010 = vmul.f32 %v985, %v1002
        %v1011 = vstv %s299
        %v1012 = vmul.f32 %v1011, %v1003
        %v1013 = vmul.f32 %v1011, %v1004
        %v1014 = vmul.f32 %v1011, %v1005
        %v1015 = vmul.f32 %v1011, %v1006
        %v1016 = vmul.f32 %v1011, %v1007
        %v1017 = vmul.f32 %v1011, %v1008
        %v1018 = vmul.f32 %v1011, %v1009
        %v1019 = vmul.f32 %v1011, %v1010
        %v1020 = vadd.f32 %v554, %v1012
        %v1021 = vadd.f32 %v555, %v1013
        %v1022 = vadd.f32 %v556, %v1014
        %v1023 = vadd.f32 %v557, %v1015
        %v1024 = vadd.f32 %v558, %v1016
        %v1025 = vadd.f32 %v559, %v1017
        %v1026 = vadd.f32 %v560, %v1018
        %v1027 = vadd.f32 %v561, %v1019
        %v1028 = vmul.f32 %v554, %v1020
        %v1029 = vmul.f32 %v555, %v1021
        %v1030 = vmul.f32 %v556, %v1022
        %v1031 = vmul.f32 %v557, %v1023
        %v1032 = vmul.f32 %v558, %v1024
        %v1033 = vmul.f32 %v559, %v1025
        %v1034 = vmul.f32 %v560, %v1026
        %v1035 = vmul.f32 %v561, %v1027
        %v1036 = vadd.f32 %v1028, %v554
        %v1037 = vadd.f32 %v1029, %v555
        %v1038 = vadd.f32 %v1030, %v556
        %v1039 = vadd.f32 %v1031, %v557
        %v1040 = vadd.f32 %v1032, %v558
        %v1041 = vadd.f32 %v1033, %v559
        %v1042 = vadd.f32 %v1034, %v560
        %v1043 = vadd.f32 %v1035, %v561
        %v1044 = vpack.c.bf16 %v1038, %v1036
        %v1045 = vpack.c.bf16 %v1039, %v1037
        %v1046 = vpack.c.bf16 %v1042, %v1040
        %v1047 = vpack.c.bf16 %v1043, %v1041
        %v1052 = vunpack.c.l.b16 %v1044
        %v1053 = vunpack.c.l.b16 %v1045
        %v1054 = vunpack.c.h.b16 %v1044
        %v1055 = vunpack.c.h.b16 %v1045
        %v1056 = vunpack.c.l.b16 %v1046
        %v1057 = vunpack.c.l.b16 %v1047
        %v1058 = vunpack.c.h.b16 %v1046
        %v1059 = vunpack.c.h.b16 %v1047
        %v1060 = vpack.c.b16 %v1053, %v1052
        %v1061 = vpack.c.b16 %v1055, %v1054
        %v1062 = vpack.c.b16 %v1057, %v1056
        %v1063 = vpack.c.b16 %v1059, %v1058
        %1068 = vst [vmem:[%s287] sm:$0xff] %v1060
        %1069 = vst [vmem:[%s287 + $0x8] sm:$0xff] %v1061
        %1070 = vst [vmem:[%s287 + $0x10] sm:$0xff] %v1062
        %1071 = vst [vmem:[%s287 + $0x18] sm:$0xff] %v1063
        %s1072 = sand.u32 %s187, 1
        %s1073 = scalar_lea.sflag [#allocation7], %s1072
        %s1074 = sand.u32 %s187, 1
        %s1075 = smul.addr %s1074, 32
        %s1076 = scalar_lea.vmem [#allocation6], %s1075
        // Predicated region
        $region49: #{tpu_custom_call.1} parent=47 // pred_check
          %p1077 = pneg %p197
        $region50: #{tpu_custom_call.1} parent=47 // pred_check_branch
          %1079 = sbr.rel (%p1077) target = $region52
        $region51: #{tpu_custom_call.1} parent=47 // pred_region
          %s1081 = ssub.s32 512, 512
          %1082 = vsyncadd %s1073, %s1081
          %s1083 = smul.addr %s22, 8
          %s1084 = smul.addr %s1083, 64
          %s1085 = scalar_lea.hbm %s7, %s1084
          %s1086 = sshll.u32 %s1076, 4
          %s1087 = int_to_ptr.vmem [resolvable:$true] %s1086
          %1092 = dma.vmem_to_hbm [thread:$0]  %s1087, 512, %s1085, %s1073, 128, 128, 8
        $region52: #{tpu_custom_call.1} parent=47 // pred_fallthru
          _
      $region48: #{tpu_custom_call.1} parent=5 // pred_fallthru
        _
      %p1093 = scmp.le.s32.totalorder 2, %s17
      // Predicated region
      $region53: #{tpu_custom_call.1} parent=5 // pred_check
        %p1094 = pneg %p1093
      $region54: #{tpu_custom_call.1} parent=5 // pred_check_branch
        %1096 = sbr.rel (%p1094) target = $region56
      $region55: #{tpu_custom_call.1} parent=5 // pred_region
        %s1097 = ssub.s32 %s17, 2
        // Predicated region
        $region57: #{tpu_custom_call.1} parent=55 // pred_check
          %p1098 = pneg %p203
        $region58: #{tpu_custom_call.1} parent=55 // pred_check_branch
          %1100 = sbr.rel (%p1098) target = $region60
        $region59: #{tpu_custom_call.1} parent=55 // pred_region
          %s1101 = sand.u32 %s188, 1
          %s1102 = scalar_lea.sflag [#allocation7], %s1101
          %s1103 = sand.u32 %s188, 1
          %s1104 = smul.addr %s1103, 32
          %s1105 = scalar_lea.vmem [#allocation6], %s1104
          %1106 = dma.done %s1102, 512
        $region60: #{tpu_custom_call.1} parent=55 // pred_fallthru
          _
      $region56: #{tpu_custom_call.1} parent=5 // pred_fallthru
        _
    $region6: #{tpu_custom_call.1} parent=1 // loop_footer
      %s21 = sadd.s32 1, %s17
    $region7: #{tpu_custom_call.1} parent=1 // loop_footer_branch
      %16 = sbr.rel target = $region3
    $region8: #{tpu_custom_call.1} parent=1 // loop_exit
      _
    %1107 = vsyncpa [#allocation7], 1
    %s1108 = scalar_lea.sflag [#allocation7], 1
    %1109 = vsyncpa %s1108, 1

</llo_original>
